<compile_context>
chip_gen: v5e
topology: v5e:2x2
jax: 0.10.0
libtpu: 0.0.40
codegen_flags: <defaults>
</compile_context>

<pallas_src>
import jax
import jax.numpy as jnp
from jax.experimental import pallas as pl
from jax.experimental.pallas import tpu as pltpu


def _g2_kernel(xt_ref, upt_ref, weff_ref, w7b_ref, beff_ref, out_ref):
    # Transposed layout:  out^T = W_eff_t @ ucoef^T + W7b @ uprev^T + b_eff
    #   xt_ref   : [d1, TM]   streamed tile of ucoef^T
    #   upt_ref  : [d,  TM]   streamed tile of uprev^T
    #   weff_ref : [d,  d1]   folded weight (resident)
    #   w7b_ref  : [d,  d ]   uprev branch of l7 (resident)
    #   beff_ref : [d,  1 ]   folded bias (resident, lane-broadcast)
    #   out_ref  : [d,  TM]   lane-dense output tile
    out = jnp.dot(weff_ref[...], xt_ref[...], preferred_element_type=jnp.float32)
    out = out + jnp.dot(w7b_ref[...], upt_ref[...], preferred_element_type=jnp.float32)
    out = out + beff_ref[...]
    out_ref[...] = out.astype(out_ref.dtype)


def _round_up(x, m):
    return ((x + m - 1) // m) * m


def g2_forward(ucoef, uprev, params, *, tm_target=1024):
    """ucoef: [B, S, d_model1], uprev: [B, S, d_model]  ->  [B, S, d_model]"""
    (w4, b4), (w5, b5), (w6, b6), (w7, b7) = params
    B, S, d1 = ucoef.shape
    d = uprev.shape[-1]
    M = B * S

    # ---- offline fold of the purely-linear chain (done at full f32 precision) ----
    w7a = w7[:, :d]            # acts on the l6 output
    w7b = w7[:, d:]            # acts on uprev
    hp = jax.lax.Precision.HIGHEST
    # W_eff^T = W7a W6 W5 W4   (shape [d, d1]), used directly in transposed layout.
    weff_t = jnp.dot(jnp.dot(jnp.dot(w7a, w6, precision=hp), w5, precision=hp),
                     w4, precision=hp)
    b_eff = jnp.dot(
        w7a, jnp.dot(w6, jnp.dot(w5, b4, precision=hp) + b5, precision=hp) + b6,
        precision=hp) + b7
    beff_2d = b_eff.reshape(d, 1).astype(jnp.float32)

    # ---- row tiling over M (lane axis in the transposed layout) ----
    TM = tm_target if M >= tm_target else _round_up(M, 128)   # lane-dense tiles
    M_pad = _round_up(M, TM)
    num_tiles = M_pad // TM

    x = ucoef.reshape(M, d1)
    up = uprev.reshape(M, d)
    if M_pad != M:
        x = jnp.pad(x, ((0, M_pad - M), (0, 0)))
        up = jnp.pad(up, ((0, M_pad - M), (0, 0)))
    xt = x.T                     # [d1, M_pad]  (wrapper-side layout plumbing)
    upt = up.T                   # [d,  M_pad]

    # Advisory cost for XLA scheduling around the custom call.
    flops = 2 * M_pad * (d * d1 + d * d)
    bytes_accessed = 4 * (M_pad * (d1 + 2 * d) + d * d1 + d * d + d)

    # TODO(synk): for very large M / d_model, stream activations in bf16 to halve
    # HBM bytes (kept f32 here to preserve the module's f32 numerics exactly).
    out_t = pl.pallas_call(
        _g2_kernel,
        out_shape=jax.ShapeDtypeStruct((d, M_pad), jnp.float32),
        grid=(num_tiles,),
        in_specs=[
            pl.BlockSpec((d1, TM), lambda i: (0, i)),   # ucoef^T tile  (streamed)
            pl.BlockSpec((d, TM), lambda i: (0, i)),    # uprev^T tile  (streamed)
            pl.BlockSpec((d, d1), lambda i: (0, 0)),    # folded weight (resident)
            pl.BlockSpec((d, d), lambda i: (0, 0)),     # W7b           (resident)
            pl.BlockSpec((d, 1), lambda i: (0, 0)),     # folded bias   (resident)
        ],
        out_specs=pl.BlockSpec((d, TM), lambda i: (0, i)),
        compiler_params=pltpu.CompilerParams(
            dimension_semantics=("parallel",),          # megacore split on v7x
            vmem_limit_bytes=32 * 1024 * 1024,
        ),
        cost_estimate=pl.CostEstimate(
            flops=flops, transcendentals=0, bytes_accessed=bytes_accessed),
    )(xt, upt, weff_t.astype(jnp.float32), w7b.astype(jnp.float32), beff_2d)

    # Back to [B, S, d]; drop the padded rows.
    return out_t.T[:M].reshape(B, S, d)


def init_params(key, d_model1, d_model):
    """Deterministic init mimicking nn.Linear's uniform(-1/sqrt(fan_in), 1/sqrt(fan_in))."""
    def linear(key, fan_in, fan_out):
        kw, kb = jax.random.split(key)
        bound = 1.0 / jnp.sqrt(fan_in)
        w = jax.random.uniform(kw, (fan_out, fan_in), jnp.float32, -bound, bound)
        b = jax.random.uniform(kb, (fan_out,), jnp.float32, -bound, bound)
        return w, b

    k4, k5, k6, k7 = jax.random.split(key, 4)
    return (
        linear(k4, d_model1, d_model),          # l4
        linear(k5, d_model, d_model),           # l5
        linear(k6, d_model, d_model),           # l6
        linear(k7, 2 * d_model, d_model),       # l7
    )


def g2_reference(ucoef, uprev, params):
    (w4, b4), (w5, b5), (w6, b6), (w7, b7) = params
    with jax.default_matmul_precision("highest"):
        h = ucoef @ w4.T + b4
        h = h @ w5.T + b5
        h = h @ w6.T + b6
        concat = jnp.concatenate([h, uprev], axis=-1)
        return concat @ w7.T + b7


if __name__ == "__main__":
    B, S = 2, 8
    d_model1, d_model = 16, 32

    key = jax.random.PRNGKey(0)
    k_params, k_ucoef, k_uprev = jax.random.split(key, 3)

    params = init_params(k_params, d_model1, d_model)
    ucoef = jax.random.normal(k_ucoef, (B, S, d_model1), jnp.float32)
    uprev = jax.random.normal(k_uprev, (B, S, d_model), jnp.float32)

    out = g2_forward(ucoef, uprev, params)
    jax.block_until_ready(out)

    ref = g2_reference(ucoef, uprev, params)
    assert out.shape == (B, S, d_model)
    max_err = jnp.max(jnp.abs(out - ref))
    assert jnp.allclose(out, ref, atol=1e-3, rtol=1e-3), f"mismatch vs reference (max abs err {max_err})"

    print("KERNEL_OK")
</pallas_src>

<mosaic_0001>
module attributes {stable_mosaic.version = 11 : i64} {
  func.func @_g2_kernel(%arg0: i32, %arg1: memref<16x128xf32, #tpu.memory_space<vmem>>, %arg2: memref<32x128xf32, #tpu.memory_space<vmem>>, %arg3: memref<32x16xf32, #tpu.memory_space<vmem>>, %arg4: memref<32x32xf32, #tpu.memory_space<vmem>>, %arg5: memref<32x1xf32, #tpu.memory_space<vmem>>, %arg6: memref<32x128xf32, #tpu.memory_space<vmem>>) attributes {dimension_semantics = [#tpu.dimension_semantics<parallel>], iteration_bounds = array<i64: 1>, scalar_prefetch = 0 : i64, scratch_operands = 0 : i64, tpu.core_type = #tpu.core_type<tc>, window_params = [{transform_indices = @transform_0, window_bounds = array<i64: 16, 128>}, {transform_indices = @transform_1, window_bounds = array<i64: 32, 128>}, {pipeline_mode = #tpu.pipeline_mode<synchronous>, transform_indices = @transform_2, window_bounds = array<i64: 32, 16>}, {pipeline_mode = #tpu.pipeline_mode<synchronous>, transform_indices = @transform_3, window_bounds = array<i64: 32, 32>}, {pipeline_mode = #tpu.pipeline_mode<synchronous>, transform_indices = @transform_4, window_bounds = array<i64: 32, 1>}, {transform_indices = @transform_5, window_bounds = array<i64: 32, 128>}]} {
    %c0 = arith.constant 0 : index
    %c0_0 = arith.constant 0 : index
    %0 = vector.load %arg3[%c0, %c0_0] : memref<32x16xf32, #tpu.memory_space<vmem>>, vector<32x16xf32>
    %c0_1 = arith.constant 0 : index
    %c0_2 = arith.constant 0 : index
    %1 = vector.load %arg1[%c0_1, %c0_2] : memref<16x128xf32, #tpu.memory_space<vmem>>, vector<16x128xf32>
    %cst = arith.constant dense<0.000000e+00> : vector<32x128xf32>
    %2 = tpu.matmul %0, %1, %cst {dimension_numbers = #tpu.dot_dimension_numbers<[1], [0], [0], [1], [0, 0, 1, 1], [], []>} : vector<32x16xf32>, vector<16x128xf32>, vector<32x128xf32> -> vector<32x128xf32>
    %c0_3 = arith.constant 0 : index
    %c0_4 = arith.constant 0 : index
    %3 = vector.load %arg4[%c0_3, %c0_4] : memref<32x32xf32, #tpu.memory_space<vmem>>, vector<32x32xf32>
    %c0_5 = arith.constant 0 : index
    %c0_6 = arith.constant 0 : index
    %4 = vector.load %arg2[%c0_5, %c0_6] : memref<32x128xf32, #tpu.memory_space<vmem>>, vector<32x128xf32>
    %cst_7 = arith.constant dense<0.000000e+00> : vector<32x128xf32>
    %5 = tpu.matmul %3, %4, %cst_7 {dimension_numbers = #tpu.dot_dimension_numbers<[1], [0], [0], [1], [0, 0, 1, 1], [], []>} : vector<32x32xf32>, vector<32x128xf32>, vector<32x128xf32> -> vector<32x128xf32>
    %6 = arith.addf %2, %5 : vector<32x128xf32>
    %c0_8 = arith.constant 0 : index
    %c0_9 = arith.constant 0 : index
    %7 = vector.load %arg5[%c0_8, %c0_9] : memref<32x1xf32, #tpu.memory_space<vmem>>, vector<32x1xf32>
    %8 = vector.broadcast %7 : vector<32x1xf32> to vector<32x128xf32>
    %9 = arith.addf %6, %8 : vector<32x128xf32>
    %c0_10 = arith.constant 0 : index
    %c0_11 = arith.constant 0 : index
    %10 = vector.load %arg6[%c0_10, %c0_11] : memref<32x128xf32, #tpu.memory_space<vmem>>, vector<32x128xf32>
    tpu.vector_store %arg6[%c0_10, %c0_11], %9 {strides = array<i32>} : memref<32x128xf32, #tpu.memory_space<vmem>>, vector<32x128xf32>,
    return
  }
  func.func @transform_0(%arg0: i32) -> (i32, i32) {
    %c0_i32 = arith.constant 0 : i32
    %c0_i32_0 = arith.constant 0 : i32
    return %c0_i32, %arg0 : i32, i32
  }
  func.func @transform_1(%arg0: i32) -> (i32, i32) {
    %c0_i32 = arith.constant 0 : i32
    %c0_i32_0 = arith.constant 0 : i32
    return %c0_i32, %arg0 : i32, i32
  }
  func.func @transform_2(%arg0: i32) -> (i32, i32) {
    %c0_i32 = arith.constant 0 : i32
    %c0_i32_0 = arith.constant 0 : i32
    %c0_i32_1 = arith.constant 0 : i32
    return %c0_i32, %c0_i32_0 : i32, i32
  }
  func.func @transform_3(%arg0: i32) -> (i32, i32) {
    %c0_i32 = arith.constant 0 : i32
    %c0_i32_0 = arith.constant 0 : i32
    %c0_i32_1 = arith.constant 0 : i32
    return %c0_i32, %c0_i32_0 : i32, i32
  }
  func.func @transform_4(%arg0: i32) -> (i32, i32) {
    %c0_i32 = arith.constant 0 : i32
    %c0_i32_0 = arith.constant 0 : i32
    %c0_i32_1 = arith.constant 0 : i32
    return %c0_i32, %c0_i32_0 : i32, i32
  }
  func.func @transform_5(%arg0: i32) -> (i32, i32) {
    %c0_i32 = arith.constant 0 : i32
    %c0_i32_0 = arith.constant 0 : i32
    return %c0_i32, %arg0 : i32, i32
  }
}

</mosaic_0001>

<llo_original>
// kernel: tpu_custom_call.1
$region0: #{tpu_custom_call.1}
  #allocation0 [shape = 'u32[]', space=smem, size = 0x4, offset = 0x4, fixed_abs, tag = 'smem constant byte address 0x4 - core index']
  #allocation1 [shape = 'u32[72,128]{1,0:T(1,128)}', space=vmem, size = 0x9000, scoped, tag = 'internal scratch']
  %s0 = inlined_call_operand.vmem [shape: f32[16,128], index: 0, kind: input, shape index: {}]
  %s1 = inlined_call_operand.vmem [shape: f32[32,128], index: 1, kind: input, shape index: {}]
  %s2 = inlined_call_operand.vmem [shape: f32[32,16], index: 2, kind: input, shape index: {}]
  %s3 = inlined_call_operand.vmem [shape: f32[32,32], index: 3, kind: input, shape index: {}]
  %s4 = inlined_call_operand.vmem [shape: f32[32,1], index: 4, kind: input, shape index: {}]
  %s5 = inlined_call_operand.hbm [shape: f32[32,128], index: 5, kind: output, shape index: {}]
  %s6 = sld [smem:[#allocation0]]
  $region30: #{tpu_custom_call.1} parent=0
    _
  %s8 = ssub.s32 1, %s6
  %s9 = scalar_select 0, %s8, %s6
  $region1: #{tpu_custom_call.1} parent=0
    #allocation2 [shape = 'u8[16384]{0}', space=vmem, size = 0x4000, scoped, tag = 'output window, operand 0, single buffered']
    #allocation3 [shape = 's32[1]{0}', space=sflag, size = 0x4, scoped, tag = 'scoped memory for tpu_custom_call.1']
    %10 = vsyncpa [#allocation3], 0
    // Predicated region
    $region2: #{tpu_custom_call.1} parent=1 // pred_check
      _
    $region3: #{tpu_custom_call.1} parent=1 // pred_check_branch
      %12 = sbr.rel (0) target = $region5
    $region4: #{tpu_custom_call.1} parent=1 // pred_region
      _
    $region5: #{tpu_custom_call.1} parent=1 // pred_fallthru
      _
    // Predicated region
    $region6: #{tpu_custom_call.1} parent=1 // pred_check
      _
    $region7: #{tpu_custom_call.1} parent=1 // pred_check_branch
      %14 = sbr.rel (0) target = $region9
    $region8: #{tpu_custom_call.1} parent=1 // pred_region
      _
    $region9: #{tpu_custom_call.1} parent=1 // pred_fallthru
      _
    // Predicated region
    $region10: #{tpu_custom_call.1} parent=1 // pred_check
      _
    $region11: #{tpu_custom_call.1} parent=1 // pred_check_branch
      %16 = sbr.rel (0) target = $region13
    $region12: #{tpu_custom_call.1} parent=1 // pred_region
      _
    $region13: #{tpu_custom_call.1} parent=1 // pred_fallthru
      _
    // Predicated region
    $region14: #{tpu_custom_call.1} parent=1 // pred_check
      _
    $region15: #{tpu_custom_call.1} parent=1 // pred_check_branch
      %18 = sbr.rel (0) target = $region17
    $region16: #{tpu_custom_call.1} parent=1 // pred_region
      _
    $region17: #{tpu_custom_call.1} parent=1 // pred_fallthru
      _
    // Predicated region
    $region18: #{tpu_custom_call.1} parent=1 // pred_check
      _
    $region19: #{tpu_custom_call.1} parent=1 // pred_check_branch
      %20 = sbr.rel (0) target = $region21
    $region20: #{tpu_custom_call.1} parent=1 // pred_region
      _
    $region21: #{tpu_custom_call.1} parent=1 // pred_fallthru
      _
    %v21 = vld [vmem:[%s2] sm:$0xff]
    %v22 = vld [vmem:[%s2 + $0x8] sm:$0xff]
    %v23 = vld [vmem:[%s2 + $0x10] sm:$0xff]
    %v24 = vld [vmem:[%s2 + $0x18] sm:$0xff]
    %v25 = vld [vmem:[%s0] sm:$0xff]
    %v26 = vld [vmem:[%s0 + $0x8] sm:$0xff]
    %v27 = vld [vmem:[%s3] sm:$0xff]
    %v28 = vld [vmem:[%s3 + $0x8] sm:$0xff]
    %v29 = vld [vmem:[%s3 + $0x10] sm:$0xff]
    %v30 = vld [vmem:[%s3 + $0x18] sm:$0xff]
    %v31 = vld [vmem:[%s1] sm:$0xff]
    %v32 = vld [vmem:[%s1 + $0x8] sm:$0xff]
    %v33 = vld [vmem:[%s1 + $0x10] sm:$0xff]
    %v34 = vld [vmem:[%s1 + $0x18] sm:$0xff]
    %vm35 = vcmask 261120
    %v37 = vsel %vm35, %v27, 0
    %v40 = vsel %vm35, %v28, 0
    %v43 = vsel %vm35, %v29, 0
    %v46 = vsel %vm35, %v30, 0
    %48 = vmatpush.msra.mxu0 0.0
    %49 = vmatpush.msra.mxu0 0.0
    %50 = vmatpush.msra.mxu0 0.0
    %51 = vmatpush.msra.mxu0 0.0
    %52 = vmatpush.msra.mxu0 0.0
    %53 = vmatpush.msra.mxu0 0.0
    %54 = vmatpush.msra.mxu0 0.0
    %55 = vmatpush.msra.mxu0 0.0
    %56 = vmatpush.msra.mxu0 0.0
    %57 = vmatpush.msra.mxu0 0.0
    %58 = vmatpush.msra.mxu0 0.0
    %59 = vmatpush.msra.mxu0 0.0
    %60 = vmatpush.msra.mxu0 %v34
    %61 = vmatpush.msra.mxu0 %v33
    %62 = vmatpush.msra.mxu0 %v32
    %63 = vmatpush.msra.mxu0 %v31
    %64 = vmatmul.f32.gmra.mxu0 %v37
    %v65 = vpop.f32.mrf.mxu0
    %v66 = vadd.f32 0.0, %v65
    %67 = vmatmul.f32.gmra.mxu0 %v40
    %v68 = vpop.f32.mrf.mxu0
    %v69 = vadd.f32 0.0, %v68
    %70 = vmatmul.f32.gmra.mxu0 %v43
    %v71 = vpop.f32.mrf.mxu0
    %v72 = vadd.f32 0.0, %v71
    %73 = vmatmul.f32.gmra.mxu0 %v46
    %v74 = vpop.f32.mrf.mxu0
    %v75 = vadd.f32 0.0, %v74
    %76 = vdwg.mxu0
    %vm77 = vcmask 130048
    %v79 = vsel %vm77, %v21, 0
    %v82 = vsel %vm77, %v22, 0
    %v85 = vsel %vm77, %v23, 0
    %v88 = vsel %vm77, %v24, 0
    %90 = vmatpush.msra.mxu0 0.0
    %91 = vmatpush.msra.mxu0 0.0
    %92 = vmatpush.msra.mxu0 0.0
    %93 = vmatpush.msra.mxu0 0.0
    %94 = vmatpush.msra.mxu0 0.0
    %95 = vmatpush.msra.mxu0 0.0
    %96 = vmatpush.msra.mxu0 0.0
    %97 = vmatpush.msra.mxu0 0.0
    %98 = vmatpush.msra.mxu0 0.0
    %99 = vmatpush.msra.mxu0 0.0
    %100 = vmatpush.msra.mxu0 0.0
    %101 = vmatpush.msra.mxu0 0.0
    %102 = vmatpush.msra.mxu0 0.0
    %103 = vmatpush.msra.mxu0 0.0
    %104 = vmatpush.msra.mxu0 %v26
    %105 = vmatpush.msra.mxu0 %v25
    %106 = vmatmul.f32.gmra.mxu0 %v79
    %v107 = vpop.f32.mrf.mxu0
    %v108 = vadd.f32 %v66, %v107
    %109 = vmatmul.f32.gmra.mxu0 %v82
    %v110 = vpop.f32.mrf.mxu0
    %v111 = vadd.f32 %v69, %v110
    %112 = vmatmul.f32.gmra.mxu0 %v85
    %v113 = vpop.f32.mrf.mxu0
    %v114 = vadd.f32 %v72, %v113
    %115 = vmatmul.f32.gmra.mxu0 %v88
    %v116 = vpop.f32.mrf.mxu0
    %v117 = vadd.f32 %v75, %v116
    %118 = vdwg.mxu0
    %v119 = vld [vmem:[%s4] sm:$0xff]
    %v120 = vld [vmem:[%s4 + $0x8] sm:$0xff]
    %v121 = vld [vmem:[%s4 + $0x10] sm:$0xff]
    %v122 = vld [vmem:[%s4 + $0x18] sm:$0xff]
    %124 = vset.pattern.permute.xlu0 0
    %125 = vperm.xlu0 %124, %v119
    %v126 = vpop.permute.xlu0 %125
    %129 = vset.pattern.permute.xlu0 0
    %130 = vperm.xlu0 %129, %v120
    %v131 = vpop.permute.xlu0 %130
    %134 = vset.pattern.permute.xlu0 0
    %135 = vperm.xlu0 %134, %v121
    %v136 = vpop.permute.xlu0 %135
    %139 = vset.pattern.permute.xlu0 0
    %140 = vperm.xlu0 %139, %v122
    %v141 = vpop.permute.xlu0 %140
    %v143 = vadd.f32 %v108, %v126
    %v144 = vadd.f32 %v111, %v131
    %v145 = vadd.f32 %v114, %v136
    %v146 = vadd.f32 %v117, %v141
    %147 = vst [vmem:[#allocation2] sm:$0xff] %v143
    %148 = vst [vmem:[#allocation2 + $0x8] sm:$0xff] %v144
    %149 = vst [vmem:[#allocation2 + $0x10] sm:$0xff] %v145
    %150 = vst [vmem:[#allocation2 + $0x18] sm:$0xff] %v146
    // Predicated region
    $region22: #{tpu_custom_call.1} parent=1 // pred_check
      _
    $region23: #{tpu_custom_call.1} parent=1 // pred_check_branch
      %152 = sbr.rel (0) target = $region25
    $region24: #{tpu_custom_call.1} parent=1 // pred_region
      %154 = vsyncadd [#allocation3], 0
      %s155 = sshll.u32 [#allocation2], 4
      %s156 = int_to_ptr.vmem [resolvable:$true] %s155
      %s157 = sshll.u32 %s5, 4
      %s158 = int_to_ptr.hbm [resolvable:$true] %s157
      %163 = dma.vmem_to_hbm [thread:$0]  %s156, 512, %s158, [#allocation3], 128, 128, 8
    $region25: #{tpu_custom_call.1} parent=1 // pred_fallthru
      _
    // Predicated region
    $region26: #{tpu_custom_call.1} parent=1 // pred_check
      _
    $region27: #{tpu_custom_call.1} parent=1 // pred_check_branch
      %165 = sbr.rel (0) target = $region29
    $region28: #{tpu_custom_call.1} parent=1 // pred_region
      %167 = dma.done [#allocation3], 512
    $region29: #{tpu_custom_call.1} parent=1 // pred_fallthru
      _
    %168 = vsyncpa [#allocation3], 1

</llo_original>
